<compile_context>
chip_gen: v7x
topology: tpu7x:2x2x1
jax: 0.10.0
libtpu: 0.0.40
codegen_flags: <defaults>
</compile_context>

<pallas_src>
import functools
import math

import jax
import jax.numpy as jnp
from jax import lax
from jax.experimental import pallas as pl
from jax.experimental.pallas import tpu as pltpu

# ----------------------------- config (synthetic, deterministic) ------------
EMBEDDING_SIZE = 32        # config.MODEL.PARAMS.VECTOR_SIZE
NUM_CLASSES = 16           # ArcFace class count
CONTRAST_MARGIN = 0.5      # config.LOSS.PARAMS.MARGIN (neg_margin; pos_margin=0)
ARC_MARGIN_RAD = math.radians(28.6)   # standard ArcFace margin
ARC_SCALE = 64.0                      # standard ArcFace scale
AFL_COEF = 1.0             # config.LOSS.PARAMS.AFL_COEF
CONTRAST_COEF = 1.0        # config.LOSS.PARAMS.CONTRAST_COEF
EPS = 1e-9
_NEG_LARGE = -1e30         # LSE mask value for non-class columns


def _sum2d(x):
    """Full reduction of a 2-D tile to a (1,1) tile (lane reduce then sublane)."""
    return jnp.sum(jnp.sum(x, axis=-1, keepdims=True), axis=0, keepdims=True)


# ----------------------------- Pallas kernel --------------------------------
def _caf_loss_kernel(emb_ref, w_ref, lab_ref, out_ref, *,
                     n, num_classes, arc_cos_m, arc_sin_m, arc_scale,
                     neg_margin, afl_coef, contrast_coef, eps):
    width = num_classes + n

    e = emb_ref[...]                                   # (N, D) f32
    w = w_ref[...]                                     # (C, D) f32
    # (1, C+N) labels: first C entries are the sentinel -1, then the N labels.
    lab_row = lab_ref[...].astype(jnp.float32)         # labels are exact in f32

    # L2-normalize embeddings and class weights (rows).  rsqrt -> EUP slot.
    e_n = e * lax.rsqrt(jnp.sum(e * e, axis=-1, keepdims=True) + eps)
    w_n = w * lax.rsqrt(jnp.sum(w * w, axis=-1, keepdims=True) + eps)

    # ---- single fused MXU contraction:  e_n @ [w_n ; e_n]^T -> (N, C+N) ----
    # Kept fused at toy sizes (one MXU push/drain); never sliced afterwards.
    rhs = jnp.concatenate([w_n, e_n], axis=0)                    # (C+N, D)
    prod = lax.dot_general(e_n, rhs, (((1,), (1,)), ((), ())),
                           preferred_element_type=jnp.float32)   # (N, C+N)

    # ---- in-kernel masks over the FULL (N, C+N) tile ------------------------
    row_ids = lax.broadcasted_iota(jnp.int32, (n, width), 0)
    col_ids = lax.broadcasted_iota(jnp.int32, (n, width), 1)
    is_class = col_ids < num_classes                    # class columns
    eye = col_ids == (row_ids + num_classes)            # diagonal of sim block
    eye_f = eye.astype(jnp.float32)

    # Derive per-row (column-form) labels from the single row-form input with
    # one cheap lane reduce: row i picks column C+i, which holds label[i].
    lab_col = jnp.sum(jnp.where(eye, lab_row, 0.0), axis=-1, keepdims=True)  # (N,1)

    # one-hot over class columns (sim columns have ids >= C, never match a label)
    onehot = (lab_col == col_ids.astype(jnp.float32)).astype(jnp.float32)
    # same-label matrix over sim columns (class columns hold the -1 sentinel)
    same = (lab_col == lab_row).astype(jnp.float32)              # (N, C+N)

    # ---------------- ArcFace branch (full width, masked LSE) ----------------
    cos = jnp.clip(prod, -1.0 + eps, 1.0 - eps)
    sin = jnp.sqrt(jnp.maximum(1.0 - cos * cos, 0.0))
    phi = cos * arc_cos_m - sin * arc_sin_m                      # cos(theta+m)
    oh_phi = onehot * phi
    logits = arc_scale * (cos + oh_phi - onehot * cos)           # oh*phi + (1-oh)*cos
    logits = jnp.where(is_class, logits, _NEG_LARGE)             # mask sim columns
    m = jnp.max(logits, axis=-1, keepdims=True)
    lse = m + jnp.log(jnp.sum(jnp.exp(logits - m), axis=-1, keepdims=True))
    target_logit = arc_scale * jnp.sum(oh_phi, axis=-1, keepdims=True)
    afl_mean = jnp.sum(lse - target_logit, axis=0, keepdims=True) * (1.0 / n)

    # ---------------- Contrastive branch (full width, masked) ----------------
    # pairwise euclidean distance of normalized embeddings: d = sqrt(2 - 2*cos)
    dist = jnp.sqrt(jnp.maximum(2.0 - 2.0 * prod, 0.0))
    pos_mask = same - eye_f                     # same-label pairs, diag removed
    neg_mask = jnp.where(is_class, 0.0, 1.0 - same)
    pos_l = dist * pos_mask                                      # pos_margin = 0
    neg_l = jnp.maximum(neg_margin - dist, 0.0) * neg_mask

    # AvgNonZeroReducer: average each sub-loss over its nonzero elements (0 if
    # none), then sum the two averages.  Plain direct reductions — no concat.
    pos_sum = _sum2d(pos_l)
    neg_sum = _sum2d(neg_l)
    pos_cnt = _sum2d((pos_l > 0.0).astype(jnp.float32))
    neg_cnt = _sum2d((neg_l > 0.0).astype(jnp.float32))
    pos_avg = jnp.where(pos_cnt > 0.0, pos_sum / jnp.maximum(pos_cnt, 1.0), 0.0)
    neg_avg = jnp.where(neg_cnt > 0.0, neg_sum / jnp.maximum(neg_cnt, 1.0), 0.0)

    out_ref[...] = afl_coef * afl_mean + contrast_coef * (pos_avg + neg_avg)


# ----------------------------- wrapper ---------------------------------------
def caf_loss(embeddings, labels, arc_w):
    """CAFLoss.forward: afl_coef * ArcFace(emb, y) + contrast_coef * Contrastive(emb, y)."""
    emb = jnp.reshape(embeddings, (-1, EMBEDDING_SIZE)).astype(jnp.float32)
    lab = jnp.reshape(labels, (-1,)).astype(jnp.int32)
    n = emb.shape[0]

    # single packed label input: (1, C+N) int32, -1 sentinel in class columns.
    lab_row_full = jnp.concatenate(
        [jnp.full((NUM_CLASSES,), -1, dtype=jnp.int32), lab])[None, :]

    kernel = functools.partial(
        _caf_loss_kernel,
        n=n,
        num_classes=NUM_CLASSES,
        arc_cos_m=math.cos(ARC_MARGIN_RAD),
        arc_sin_m=math.sin(ARC_MARGIN_RAD),
        arc_scale=ARC_SCALE,
        neg_margin=CONTRAST_MARGIN,
        afl_coef=AFL_COEF,
        contrast_coef=CONTRAST_COEF,
        eps=EPS,
    )

    vmem = pltpu.MemorySpace.VMEM
    out = pl.pallas_call(
        kernel,
        out_shape=jax.ShapeDtypeStruct((1, 1), jnp.float32),
        in_specs=[pl.BlockSpec(memory_space=vmem)] * 3,
        out_specs=pl.BlockSpec(memory_space=vmem),
    )(emb, arc_w.astype(jnp.float32), lab_row_full)
    return out[0, 0]


# ----------------------------- pure-JAX reference ----------------------------
def caf_loss_ref(embeddings, labels, arc_w):
    emb = jnp.reshape(embeddings, (-1, EMBEDDING_SIZE)).astype(jnp.float32)
    lab = jnp.reshape(labels, (-1,))
    n = emb.shape[0]

    e_n = emb / jnp.sqrt(jnp.sum(emb * emb, -1, keepdims=True) + EPS)
    w_n = arc_w / jnp.sqrt(jnp.sum(arc_w * arc_w, -1, keepdims=True) + EPS)

    cos = jnp.clip(e_n @ w_n.T, -1.0 + EPS, 1.0 - EPS)
    sin = jnp.sqrt(jnp.maximum(1.0 - cos * cos, 0.0))
    phi = cos * math.cos(ARC_MARGIN_RAD) - sin * math.sin(ARC_MARGIN_RAD)
    onehot = jax.nn.one_hot(lab, NUM_CLASSES, dtype=jnp.float32)
    logits = ARC_SCALE * (onehot * phi + (1.0 - onehot) * cos)
    afl = jnp.mean(jax.nn.logsumexp(logits, -1) - jnp.sum(logits * onehot, -1))

    sim = e_n @ e_n.T
    dist = jnp.sqrt(jnp.maximum(2.0 - 2.0 * sim, 0.0))
    same = lab[:, None] == lab[None, :]
    eye = jnp.eye(n, dtype=bool)
    pos_l = jnp.maximum(dist, 0.0) * (same & ~eye)
    neg_l = jnp.maximum(CONTRAST_MARGIN - dist, 0.0) * (~same)
    pc = jnp.sum(pos_l > 0)
    nc = jnp.sum(neg_l > 0)
    pa = jnp.where(pc > 0, jnp.sum(pos_l) / jnp.maximum(pc, 1), 0.0)
    na = jnp.where(nc > 0, jnp.sum(neg_l) / jnp.maximum(nc, 1), 0.0)
    return AFL_COEF * afl + CONTRAST_COEF * (pa + na)


# ----------------------------- main -------------------------------------------
if __name__ == "__main__":
    key = jax.random.PRNGKey(0)
    k_emb, k_w = jax.random.split(key)

    # embeddings: (batch=2, seq=4, embedding_size=32)  -> reshaped to (8, 32)
    embeddings = jax.random.normal(k_emb, (2, 4, EMBEDDING_SIZE), dtype=jnp.float32)
    labels = jnp.array([[0, 0, 1, 1], [2, 2, 3, 3]], dtype=jnp.int32)

    # ArcFace weight matrix (num_classes, embedding_size), deterministic init.
    arc_w = 0.01 * jax.random.normal(k_w, (NUM_CLASSES, EMBEDDING_SIZE),
                                     dtype=jnp.float32)

    loss = caf_loss(embeddings, labels, arc_w)
    jax.block_until_ready(loss)

    ref = caf_loss_ref(embeddings, labels, arc_w)
    assert jnp.allclose(loss, ref, rtol=1e-4, atol=1e-4), (loss, ref)

    print("KERNEL_OK")
</pallas_src>

<mosaic_0001>
module attributes {stable_mosaic.version = 11 : i64} {
  func.func @_caf_loss_kernel(%arg0: memref<8x32xf32, #tpu.memory_space<vmem>>, %arg1: memref<16x32xf32, #tpu.memory_space<vmem>>, %arg2: memref<1x24xi32, #tpu.memory_space<vmem>>, %arg3: memref<1x1xf32, #tpu.memory_space<vmem>>) attributes {dimension_semantics = [], scalar_prefetch = 0 : i64, scratch_operands = 0 : i64, tpu.core_type = #tpu.core_type<tc>} {
    %c0 = arith.constant 0 : index
    %c0_0 = arith.constant 0 : index
    %0 = vector.load %arg0[%c0, %c0_0] : memref<8x32xf32, #tpu.memory_space<vmem>>, vector<8x32xf32>
    %c0_1 = arith.constant 0 : index
    %c0_2 = arith.constant 0 : index
    %1 = vector.load %arg1[%c0_1, %c0_2] : memref<16x32xf32, #tpu.memory_space<vmem>>, vector<16x32xf32>
    %c0_3 = arith.constant 0 : index
    %c0_4 = arith.constant 0 : index
    %2 = vector.load %arg2[%c0_3, %c0_4] : memref<1x24xi32, #tpu.memory_space<vmem>>, vector<1x24xi32>
    %3 = arith.sitofp %2 : vector<1x24xi32> to vector<1x24xf32>
    %4 = arith.mulf %0, %0 : vector<8x32xf32>
    %cst = arith.constant dense<0.000000e+00> : vector<8xf32>
    %5 = vector.multi_reduction <add>, %4, %cst [1] : vector<8x32xf32> to vector<8xf32>
    %6 = vector.shape_cast %5 : vector<8xf32> to vector<8x1xf32>
    %cst_5 = arith.constant 9.99999971E-10 : f32
    %7 = vector.broadcast %cst_5 : f32 to vector<8x1xf32>
    %8 = arith.addf %6, %7 : vector<8x1xf32>
    %9 = math.rsqrt %8 : vector<8x1xf32>
    %10 = vector.broadcast %9 : vector<8x1xf32> to vector<8x32xf32>
    %11 = arith.mulf %0, %10 : vector<8x32xf32>
    %12 = arith.mulf %1, %1 : vector<16x32xf32>
    %cst_6 = arith.constant dense<0.000000e+00> : vector<16xf32>
    %13 = vector.multi_reduction <add>, %12, %cst_6 [1] : vector<16x32xf32> to vector<16xf32>
    %14 = vector.shape_cast %13 : vector<16xf32> to vector<16x1xf32>
    %cst_7 = arith.constant 9.99999971E-10 : f32
    %15 = vector.broadcast %cst_7 : f32 to vector<16x1xf32>
    %16 = arith.addf %14, %15 : vector<16x1xf32>
    %17 = math.rsqrt %16 : vector<16x1xf32>
    %18 = vector.broadcast %17 : vector<16x1xf32> to vector<16x32xf32>
    %19 = arith.mulf %1, %18 : vector<16x32xf32>
    %20 = tpu.concatenate %19, %11 in 0 : vector<16x32xf32>, vector<8x32xf32> -> vector<24x32xf32>
    %cst_8 = arith.constant dense<0.000000e+00> : vector<8x24xf32>
    %21 = tpu.matmul %11, %20, %cst_8 {dimension_numbers = #tpu.dot_dimension_numbers<[1], [1], [0], [0], [0, 0, 1, 0], [], []>} : vector<8x32xf32>, vector<24x32xf32>, vector<8x24xf32> -> vector<8x24xf32>
    %22 = tpu.iota {dimensions = array<i32: 0>} : vector<8x24xi32>
    %23 = tpu.iota {dimensions = array<i32: 1>} : vector<8x24xi32>
    %c16_i32 = arith.constant 16 : i32
    %24 = vector.broadcast %c16_i32 : i32 to vector<8x24xi32>
    %25 = arith.cmpi slt, %23, %24 : vector<8x24xi32>
    %c16_i32_9 = arith.constant 16 : i32
    %26 = vector.broadcast %c16_i32_9 : i32 to vector<8x24xi32>
    %27 = arith.addi %22, %26 : vector<8x24xi32>
    %28 = arith.cmpi eq, %23, %27 : vector<8x24xi32>
    %29 = arith.extui %28 : vector<8x24xi1> to vector<8x24xi32>
    %30 = arith.sitofp %29 : vector<8x24xi32> to vector<8x24xf32>
    %cst_10 = arith.constant 0.000000e+00 : f32
    %31 = vector.shape_cast %3 : vector<1x24xf32> to vector<1x24xf32>
    %32 = vector.broadcast %31 : vector<1x24xf32> to vector<8x24xf32>
    %33 = vector.broadcast %cst_10 : f32 to vector<8x24xf32>
    %34 = arith.select %28, %32, %33 : vector<8x24xi1>, vector<8x24xf32>
    %cst_11 = arith.constant dense<0.000000e+00> : vector<8xf32>
    %35 = vector.multi_reduction <add>, %34, %cst_11 [1] : vector<8x24xf32> to vector<8xf32>
    %36 = vector.shape_cast %35 : vector<8xf32> to vector<8x1xf32>
    %37 = arith.sitofp %23 : vector<8x24xi32> to vector<8x24xf32>
    %38 = vector.broadcast %36 : vector<8x1xf32> to vector<8x24xf32>
    %39 = arith.cmpf oeq, %38, %37 : vector<8x24xf32>
    %40 = arith.extui %39 : vector<8x24xi1> to vector<8x24xi32>
    %41 = arith.sitofp %40 : vector<8x24xi32> to vector<8x24xf32>
    %42 = vector.broadcast %36 : vector<8x1xf32> to vector<8x24xf32>
    %43 = vector.broadcast %3 : vector<1x24xf32> to vector<8x24xf32>
    %44 = arith.cmpf oeq, %42, %43 : vector<8x24xf32>
    %45 = arith.extui %44 : vector<8x24xi1> to vector<8x24xi32>
    %46 = arith.sitofp %45 : vector<8x24xi32> to vector<8x24xf32>
    %cst_12 = arith.constant -1.000000e+00 : f32
    %cst_13 = arith.constant 1.000000e+00 : f32
    %47 = vector.broadcast %cst_12 : f32 to vector<8x24xf32>
    %48 = arith.maximumf %47, %21 : vector<8x24xf32>
    %49 = vector.broadcast %cst_13 : f32 to vector<8x24xf32>
    %50 = arith.minimumf %49, %48 : vector<8x24xf32>
    %51 = arith.mulf %50, %50 : vector<8x24xf32>
    %cst_14 = arith.constant 1.000000e+00 : f32
    %52 = vector.broadcast %cst_14 : f32 to vector<8x24xf32>
    %53 = arith.subf %52, %51 : vector<8x24xf32>
    %cst_15 = arith.constant 0.000000e+00 : f32
    %54 = vector.broadcast %cst_15 : f32 to vector<8x24xf32>
    %55 = arith.maximumf %53, %54 : vector<8x24xf32>
    %56 = math.sqrt %55 : vector<8x24xf32>
    %cst_16 = arith.constant 0.877982974 : f32
    %57 = vector.broadcast %cst_16 : f32 to vector<8x24xf32>
    %58 = arith.mulf %50, %57 : vector<8x24xf32>
    %cst_17 = arith.constant 0.478691846 : f32
    %59 = vector.broadcast %cst_17 : f32 to vector<8x24xf32>
    %60 = arith.mulf %56, %59 : vector<8x24xf32>
    %61 = arith.subf %58, %60 : vector<8x24xf32>
    %62 = arith.mulf %41, %61 : vector<8x24xf32>
    %63 = arith.addf %50, %62 : vector<8x24xf32>
    %64 = arith.mulf %41, %50 : vector<8x24xf32>
    %65 = arith.subf %63, %64 : vector<8x24xf32>
    %cst_18 = arith.constant 6.400000e+01 : f32
    %66 = vector.broadcast %cst_18 : f32 to vector<8x24xf32>
    %67 = arith.mulf %66, %65 : vector<8x24xf32>
    %cst_19 = arith.constant -1.000000e+30 : f32
    %68 = vector.broadcast %cst_19 : f32 to vector<8x24xf32>
    %69 = arith.select %25, %67, %68 : vector<8x24xi1>, vector<8x24xf32>
    %cst_20 = arith.constant dense<0xFF800000> : vector<8xf32>
    %70 = vector.multi_reduction <maximumf>, %69, %cst_20 [1] : vector<8x24xf32> to vector<8xf32>
    %71 = vector.shape_cast %70 : vector<8xf32> to vector<8x1xf32>
    %72 = vector.broadcast %71 : vector<8x1xf32> to vector<8x24xf32>
    %73 = arith.subf %69, %72 : vector<8x24xf32>
    %74 = math.exp %73 : vector<8x24xf32>
    %cst_21 = arith.constant dense<0.000000e+00> : vector<8xf32>
    %75 = vector.multi_reduction <add>, %74, %cst_21 [1] : vector<8x24xf32> to vector<8xf32>
    %76 = vector.shape_cast %75 : vector<8xf32> to vector<8x1xf32>
    %77 = math.log %76 : vector<8x1xf32>
    %78 = arith.addf %71, %77 : vector<8x1xf32>
    %cst_22 = arith.constant dense<0.000000e+00> : vector<8xf32>
    %79 = vector.multi_reduction <add>, %62, %cst_22 [1] : vector<8x24xf32> to vector<8xf32>
    %80 = vector.shape_cast %79 : vector<8xf32> to vector<8x1xf32>
    %cst_23 = arith.constant 6.400000e+01 : f32
    %81 = vector.broadcast %cst_23 : f32 to vector<8x1xf32>
    %82 = arith.mulf %81, %80 : vector<8x1xf32>
    %83 = arith.subf %78, %82 : vector<8x1xf32>
    %cst_24 = arith.constant dense<0.000000e+00> : vector<1xf32>
    %84 = vector.multi_reduction <add>, %83, %cst_24 [0] : vector<8x1xf32> to vector<1xf32>
    %85 = vector.shape_cast %84 : vector<1xf32> to vector<1x1xf32>
    %cst_25 = arith.constant 1.250000e-01 : f32
    %86 = vector.broadcast %cst_25 : f32 to vector<1x1xf32>
    %87 = arith.mulf %85, %86 : vector<1x1xf32>
    %cst_26 = arith.constant 2.000000e+00 : f32
    %88 = vector.broadcast %cst_26 : f32 to vector<8x24xf32>
    %89 = arith.mulf %88, %21 : vector<8x24xf32>
    %cst_27 = arith.constant 2.000000e+00 : f32
    %90 = vector.broadcast %cst_27 : f32 to vector<8x24xf32>
    %91 = arith.subf %90, %89 : vector<8x24xf32>
    %cst_28 = arith.constant 0.000000e+00 : f32
    %92 = vector.broadcast %cst_28 : f32 to vector<8x24xf32>
    %93 = arith.maximumf %91, %92 : vector<8x24xf32>
    %94 = math.sqrt %93 : vector<8x24xf32>
    %95 = arith.subf %46, %30 : vector<8x24xf32>
    %cst_29 = arith.constant 1.000000e+00 : f32
    %96 = vector.broadcast %cst_29 : f32 to vector<8x24xf32>
    %97 = arith.subf %96, %46 : vector<8x24xf32>
    %cst_30 = arith.constant 0.000000e+00 : f32
    %98 = vector.broadcast %cst_30 : f32 to vector<8x24xf32>
    %99 = arith.select %25, %98, %97 : vector<8x24xi1>, vector<8x24xf32>
    %100 = arith.mulf %94, %95 : vector<8x24xf32>
    %cst_31 = arith.constant 5.000000e-01 : f32
    %101 = vector.broadcast %cst_31 : f32 to vector<8x24xf32>
    %102 = arith.subf %101, %94 : vector<8x24xf32>
    %cst_32 = arith.constant 0.000000e+00 : f32
    %103 = vector.broadcast %cst_32 : f32 to vector<8x24xf32>
    %104 = arith.maximumf %102, %103 : vector<8x24xf32>
    %105 = arith.mulf %104, %99 : vector<8x24xf32>
    %cst_33 = arith.constant dense<0.000000e+00> : vector<8xf32>
    %106 = vector.multi_reduction <add>, %100, %cst_33 [1] : vector<8x24xf32> to vector<8xf32>
    %107 = vector.shape_cast %106 : vector<8xf32> to vector<8x1xf32>
    %cst_34 = arith.constant dense<0.000000e+00> : vector<1xf32>
    %108 = vector.multi_reduction <add>, %107, %cst_34 [0] : vector<8x1xf32> to vector<1xf32>
    %109 = vector.shape_cast %108 : vector<1xf32> to vector<1x1xf32>
    %cst_35 = arith.constant dense<0.000000e+00> : vector<8xf32>
    %110 = vector.multi_reduction <add>, %105, %cst_35 [1] : vector<8x24xf32> to vector<8xf32>
    %111 = vector.shape_cast %110 : vector<8xf32> to vector<8x1xf32>
    %cst_36 = arith.constant dense<0.000000e+00> : vector<1xf32>
    %112 = vector.multi_reduction <add>, %111, %cst_36 [0] : vector<8x1xf32> to vector<1xf32>
    %113 = vector.shape_cast %112 : vector<1xf32> to vector<1x1xf32>
    %cst_37 = arith.constant 0.000000e+00 : f32
    %114 = vector.broadcast %cst_37 : f32 to vector<8x24xf32>
    %115 = arith.cmpf ogt, %100, %114 : vector<8x24xf32>
    %116 = arith.extui %115 : vector<8x24xi1> to vector<8x24xi32>
    %117 = arith.sitofp %116 : vector<8x24xi32> to vector<8x24xf32>
    %cst_38 = arith.constant dense<0.000000e+00> : vector<8xf32>
    %118 = vector.multi_reduction <add>, %117, %cst_38 [1] : vector<8x24xf32> to vector<8xf32>
    %119 = vector.shape_cast %118 : vector<8xf32> to vector<8x1xf32>
    %cst_39 = arith.constant dense<0.000000e+00> : vector<1xf32>
    %120 = vector.multi_reduction <add>, %119, %cst_39 [0] : vector<8x1xf32> to vector<1xf32>
    %121 = vector.shape_cast %120 : vector<1xf32> to vector<1x1xf32>
    %cst_40 = arith.constant 0.000000e+00 : f32
    %122 = vector.broadcast %cst_40 : f32 to vector<8x24xf32>
    %123 = arith.cmpf ogt, %105, %122 : vector<8x24xf32>
    %124 = arith.extui %123 : vector<8x24xi1> to vector<8x24xi32>
    %125 = arith.sitofp %124 : vector<8x24xi32> to vector<8x24xf32>
    %cst_41 = arith.constant dense<0.000000e+00> : vector<8xf32>
    %126 = vector.multi_reduction <add>, %125, %cst_41 [1] : vector<8x24xf32> to vector<8xf32>
    %127 = vector.shape_cast %126 : vector<8xf32> to vector<8x1xf32>
    %cst_42 = arith.constant dense<0.000000e+00> : vector<1xf32>
    %128 = vector.multi_reduction <add>, %127, %cst_42 [0] : vector<8x1xf32> to vector<1xf32>
    %129 = vector.shape_cast %128 : vector<1xf32> to vector<1x1xf32>
    %cst_43 = arith.constant 0.000000e+00 : f32
    %130 = vector.broadcast %cst_43 : f32 to vector<1x1xf32>
    %131 = arith.cmpf ogt, %121, %130 : vector<1x1xf32>
    %cst_44 = arith.constant 1.000000e+00 : f32
    %132 = vector.broadcast %cst_44 : f32 to vector<1x1xf32>
    %133 = arith.maximumf %121, %132 : vector<1x1xf32>
    %134 = arith.divf %109, %133 : vector<1x1xf32>
    %cst_45 = arith.constant 0.000000e+00 : f32
    %135 = vector.broadcast %cst_45 : f32 to vector<1x1xf32>
    %136 = arith.select %131, %134, %135 : vector<1x1xi1>, vector<1x1xf32>
    %cst_46 = arith.constant 0.000000e+00 : f32
    %137 = vector.broadcast %cst_46 : f32 to vector<1x1xf32>
    %138 = arith.cmpf ogt, %129, %137 : vector<1x1xf32>
    %cst_47 = arith.constant 1.000000e+00 : f32
    %139 = vector.broadcast %cst_47 : f32 to vector<1x1xf32>
    %140 = arith.maximumf %129, %139 : vector<1x1xf32>
    %141 = arith.divf %113, %140 : vector<1x1xf32>
    %cst_48 = arith.constant 0.000000e+00 : f32
    %142 = vector.broadcast %cst_48 : f32 to vector<1x1xf32>
    %143 = arith.select %138, %141, %142 : vector<1x1xi1>, vector<1x1xf32>
    %cst_49 = arith.constant 1.000000e+00 : f32
    %144 = vector.broadcast %cst_49 : f32 to vector<1x1xf32>
    %145 = arith.mulf %144, %87 : vector<1x1xf32>
    %146 = arith.addf %136, %143 : vector<1x1xf32>
    %cst_50 = arith.constant 1.000000e+00 : f32
    %147 = vector.broadcast %cst_50 : f32 to vector<1x1xf32>
    %148 = arith.mulf %147, %146 : vector<1x1xf32>
    %149 = arith.addf %145, %148 : vector<1x1xf32>
    %c0_51 = arith.constant 0 : index
    %c0_52 = arith.constant 0 : index
    %150 = vector.load %arg3[%c0_51, %c0_52] : memref<1x1xf32, #tpu.memory_space<vmem>>, vector<1x1xf32>
    tpu.vector_store %arg3[%c0_51, %c0_52], %149 {strides = array<i32>} : memref<1x1xf32, #tpu.memory_space<vmem>>, vector<1x1xf32>,
    return
  }
}

</mosaic_0001>

<llo_original>
// kernel: tpu_custom_call.1
$region0: #{tpu_custom_call.1}
  #allocation0 [shape = 'u32[]', space=smem, size = 0x4, offset = 0x4, fixed_abs, tag = 'smem constant byte address 0x4 - core index']
  #allocation1 [shape = 'u32[144,128]{1,0:T(1,128)}', space=vmem, size = 0x12000, scoped, tag = 'internal scratch']
  %s0 = inlined_call_operand.hbm [shape: f32[8,32], index: 0, kind: input, shape index: {}]
  %s1 = inlined_call_operand.hbm [shape: f32[16,32], index: 1, kind: input, shape index: {}]
  %s2 = inlined_call_operand.vmem [shape: s32[1,24], index: 2, kind: input, shape index: {}]
  %s3 = inlined_call_operand.hbm [shape: f32[1,1], index: 3, kind: output, shape index: {}]
  %s4 = sld [smem:[#allocation0]]
  $region30: #{tpu_custom_call.1} parent=0
    _
  %s6 = ssub.s32 1, %s4
  %s7 = scalar_select 0, %s6, %s4
  $region1: #{tpu_custom_call.1} parent=0
    #allocation2 [shape = 'u8[4096]{0}', space=vmem, size = 0x1000, scoped, tag = 'input window, operand 0, single buffered']
    #allocation3 [shape = 's32[1]{0}', space=sflag, size = 0x4, scoped, tag = 'scoped memory for tpu_custom_call.1']
    #allocation4 [shape = 's32[1]{0}', space=sflag, size = 0x4, scoped, tag = 'scoped memory for tpu_custom_call.1']
    #allocation5 [shape = 'u8[8192]{0}', space=vmem, size = 0x2000, scoped, tag = 'input window, operand 1, single buffered']
    #allocation6 [shape = 's32[1]{0}', space=sflag, size = 0x4, scoped, tag = 'scoped memory for tpu_custom_call.1']
    #allocation7 [shape = 'u8[512]{0}', space=vmem, size = 0x400, scoped, tag = 'output window, operand 0, single buffered']
    %8 = vsyncpa [#allocation3], 0
    %9 = vsyncpa [#allocation6], 0
    %10 = vsyncpa [#allocation4], 0
    // Predicated region
    $region2: #{tpu_custom_call.1} parent=1 // pred_check
      _
    $region3: #{tpu_custom_call.1} parent=1 // pred_check_branch
      %12 = sbr.rel (0) target = $region5
    $region4: #{tpu_custom_call.1} parent=1 // pred_region
      %s14 = ssub.s32 128, 128
      %15 = vsyncadd [#allocation3], %s14
      %s17 = sshll.u32 [#allocation2], 4
      %s18 = int_to_ptr.vmem [resolvable:$true] %s17
      %20 = dma.hbm_to_vmem [thread:$0]  %s0, 128, %s18, [#allocation3]
    $region5: #{tpu_custom_call.1} parent=1 // pred_fallthru
      _
    // Predicated region
    $region6: #{tpu_custom_call.1} parent=1 // pred_check
      _
    $region7: #{tpu_custom_call.1} parent=1 // pred_check_branch
      %22 = sbr.rel (0) target = $region9
    $region8: #{tpu_custom_call.1} parent=1 // pred_region
      %s24 = ssub.s32 256, 256
      %25 = vsyncadd [#allocation6], %s24
      %s26 = sshll.u32 [#allocation5], 4
      %s27 = int_to_ptr.vmem [resolvable:$true] %s26
      %32 = dma.hbm_to_vmem [thread:$0]  %s1, 256, %s27, [#allocation6], 128, 128, 8
    $region9: #{tpu_custom_call.1} parent=1 // pred_fallthru
      _
    // Predicated region
    $region10: #{tpu_custom_call.1} parent=1 // pred_check
      _
    $region11: #{tpu_custom_call.1} parent=1 // pred_check_branch
      %34 = sbr.rel (0) target = $region13
    $region12: #{tpu_custom_call.1} parent=1 // pred_region
      _
    $region13: #{tpu_custom_call.1} parent=1 // pred_fallthru
      _
    // Predicated region
    $region14: #{tpu_custom_call.1} parent=1 // pred_check
      _
    $region15: #{tpu_custom_call.1} parent=1 // pred_check_branch
      %36 = sbr.rel (0) target = $region17
    $region16: #{tpu_custom_call.1} parent=1 // pred_region
      %37 = dma.done [#allocation3], 128
    $region17: #{tpu_custom_call.1} parent=1 // pred_fallthru
      _
    // Predicated region
    $region18: #{tpu_custom_call.1} parent=1 // pred_check
      _
    $region19: #{tpu_custom_call.1} parent=1 // pred_check_branch
      %39 = sbr.rel (0) target = $region21
    $region20: #{tpu_custom_call.1} parent=1 // pred_region
      %40 = dma.done [#allocation6], 256
    $region21: #{tpu_custom_call.1} parent=1 // pred_fallthru
      _
    %v41 = vld [vmem:[#allocation2] sm:$0xff]
    %v42 = vld [vmem:[#allocation5] sm:$0xff]
    %v43 = vld [vmem:[#allocation5 + $0x8] sm:$0xff]
    %v44 = vld [vmem:[%s2] sm:$0x1]
    %v45 = vcvt.s32.f32 %v44
    %v46 = vmul.f32 %v41, %v41
    %vm47 = vcmask 261120
    %v48 = vsel %vm47, %v46, 0.0
    %49 = vadd.xlane.f32.xlu0 %v48
    %v50 = vpop.xlane.xlu0 %49
    %v51 = vadd.f32 %v50, 1e-09
    %v52 = vrsqrt.pop %v51
    %v53 = vmul.f32 %v41, %v52
    %v54 = vmul.f32 %v42, %v42
    %v55 = vmul.f32 %v43, %v43
    %v56 = vsel %vm47, %v54, 0.0
    %57 = vadd.xlane.f32.xlu0 %v56
    %v58 = vpop.xlane.xlu0 %57
    %v59 = vsel %vm47, %v55, 0.0
    %60 = vadd.xlane.f32.xlu0 %v59
    %v61 = vpop.xlane.xlu0 %60
    %v62 = vadd.f32 %v58, 1e-09
    %v63 = vadd.f32 %v61, 1e-09
    %v64 = vrsqrt.pop %v62
    %v65 = vrsqrt.pop %v63
    %v66 = vmul.f32 %v42, %v64
    %v67 = vmul.f32 %v43, %v65
    %v69 = vsel %vm47, %v53, 0
    %v72 = vsel %vm47, %v66, 0
    %v75 = vsel %vm47, %v67, 0
    %77 = vmatprep.subr.mxu0 0.0
    %78 = vmatpush1.xpose.msra.mxu0 %v72
    %79 = vmatprep.subr.mxu0 0.0
    %80 = vmatpush1.xpose.msra.mxu0 %v75
    %81 = vmatprep.subr.mxu0 0.0
    %82 = vmatpush1.xpose.msra.mxu0 %v69
    %83 = vmatprep.subr.mxu0 0.0
    %84 = vmatpush1.xpose.msra.mxu0 0.0
    %85 = vmatprep.subr.mxu0 0.0
    %86 = vmatpush1.xpose.msra.mxu0 0.0
    %87 = vmatprep.subr.mxu0 0.0
    %88 = vmatpush1.xpose.msra.mxu0 0.0
    %89 = vmatprep.subr.mxu0 0.0
    %90 = vmatpush1.xpose.msra.mxu0 0.0
    %91 = vmatprep.subr.mxu0 0.0
    %92 = vmatpush1.xpose.msra.mxu0 0.0
    %93 = vmatprep.subr.mxu0 0.0
    %94 = vmatpush1.xpose.msra.mxu0 0.0
    %95 = vmatprep.subr.mxu0 0.0
    %96 = vmatpush1.xpose.msra.mxu0 0.0
    %97 = vmatprep.subr.mxu0 0.0
    %98 = vmatpush1.xpose.msra.mxu0 0.0
    %99 = vmatprep.subr.mxu0 0.0
    %100 = vmatpush1.xpose.msra.mxu0 0.0
    %101 = vmatprep.subr.mxu0 0.0
    %102 = vmatpush1.xpose.msra.mxu0 0.0
    %103 = vmatprep.subr.mxu0 0.0
    %104 = vmatpush1.xpose.msra.mxu0 0.0
    %105 = vmatprep.subr.mxu0 0.0
    %106 = vmatpush1.xpose.msra.mxu0 0.0
    %107 = vmatprep.subr.mxu0 0.0
    %108 = vmatpush1.xpose.msra.mxu0 0.0
    %109 = vmatprep.subr.mxu0 0.0
    %110 = vmatpush1.xpose.msra.mxu0 0.0
    %111 = vmatprep.subr.mxu0 0.0
    %112 = vmatpush1.xpose.msra.mxu0 0.0
    %113 = vmatprep.subr.mxu0 0.0
    %114 = vmatpush1.xpose.msra.mxu0 0.0
    %115 = vmatprep.subr.mxu0 0.0
    %116 = vmatpush1.xpose.msra.mxu0 0.0
    %117 = vmatprep.subr.mxu0 0.0
    %118 = vmatpush1.xpose.msra.mxu0 0.0
    %119 = vmatprep.subr.mxu0 0.0
    %120 = vmatpush1.xpose.msra.mxu0 0.0
    %121 = vmatprep.subr.mxu0 0.0
    %122 = vmatpush1.xpose.msra.mxu0 0.0
    %123 = vmatprep.subr.mxu0 0.0
    %124 = vmatpush1.xpose.msra.mxu0 0.0
    %125 = vmatprep.subr.mxu0 0.0
    %126 = vmatpush1.xpose.msra.mxu0 0.0
    %127 = vmatprep.subr.mxu0 0.0
    %128 = vmatpush1.xpose.msra.mxu0 0.0
    %129 = vmatprep.subr.mxu0 0.0
    %130 = vmatpush1.xpose.msra.mxu0 0.0
    %131 = vmatprep.subr.mxu0 0.0
    %132 = vmatpush1.xpose.msra.mxu0 0.0
    %133 = vmatprep.subr.mxu0 0.0
    %134 = vmatpush1.xpose.msra.mxu0 0.0
    %135 = vmatprep.subr.mxu0 0.0
    %136 = vmatpush1.xpose.msra.mxu0 0.0
    %137 = vmatprep.subr.mxu0 0.0
    %138 = vmatpush1.xpose.msra.mxu0 0.0
    %139 = vmatprep.subr.mxu0 0.0
    %140 = vmatpush1.xpose.msra.mxu0 0.0
    %141 = vmatprep.mubr.f32.mxu0 0.0
    %142 = vmatmul.mubr.f32.gmra.mrb[0].mxu0 %v69
    %v143 = vpop.f32.mrb[0].mxu0
    %v144 = vadd.f32 0.0, %v143
    %v145 = vpop.f32.mrb[0].mxu0
    %146 = vdwg.mxu0
    %v147 = vlaneseq
    %v148 = vshrl.u32 %v147, 7
    %v149 = vlaneseq
    %v150 = vand.u32 %v149, 127
    %vm151 = vcmp.lt.s32.totalorder %v150, 16
    %v152 = vadd.s32 %v148, 16
    %vm153 = vcmp.eq.s32.totalorder %v150, %v152
    %v154 = vsel %vm153, 1, 0
    %v155 = vcvt.s32.f32 %v154
    %v157 = vlaneseq
    %v158 = vshrl.u32 %v157, 7
    %v159 = vsub.s32 0, %v158
    %v160 = vrot.slane %v45, %v159
    %v162 = vsel %vm153, %v160, 0.0
    %vm163 = vcmask 195584
    %v164 = vsel %vm163, %v162, 0.0
    %165 = vadd.xlane.f32.xlu0 %v164
    %v166 = vpop.xlane.xlu0 %165
    %v167 = vcvt.s32.f32 %v150
    %vm168 = vcmp.eq.f32.partialorder %v166, %v167
    %v169 = vsel %vm168, 1, 0
    %v170 = vcvt.s32.f32 %v169
    %vm171 = vcmp.eq.f32.partialorder %v166, %v160
    %v172 = vsel %vm171, 1, 0
    %v173 = vcvt.s32.f32 %v172
    %v174 = vmax.f32 %v144, -1.0
    %v175 = vmin.f32 %v174, 1.0
    %v176 = vmul.f32 %v175, %v175
    %v177 = vsub.f32 1.0, %v176
    %v178 = vmax.f32 %v177, 0.0
    %v179 = vrsqrt.pop %v178
    %v180 = vmul.f32 %v178, %v179
    %vm181 = vcmp.eq.f32.partialorder %v178, inf
    %v182 = vsel %vm181, %v178, %v180
    %vm183 = vcmp.eq.f32.partialorder %v178, 0.0
    %v184 = vand.u32 %v178, 2147483648
    %v185 = vsel %vm183, %v184, %v182
    %v186 = vmul.f32 %v175, 0.877983
    %v187 = vmul.f32 %v185, 0.47869185
    %v188 = vsub.f32 %v186, %v187
    %v189 = vmul.f32 %v170, %v188
    %v190 = vadd.f32 %v175, %v189
    %v191 = vmul.f32 %v170, %v175
    %v192 = vsub.f32 %v190, %v191
    %v193 = vmul.f32 %v192, 64.0
    %v194 = vsel %vm151, %v193, -1e+30
    %v195 = vsel %vm163, %v194, -inf
    %196 = vmax.xlane.f32.xlu0 %v195
    %v197 = vpop.xlane.xlu0 %196
    %v198 = vsub.f32 %v194, %v197
    %v199 = vmul.f32 %v198, 1.442695
    %v200 = vpow.pop %v199
    %v201 = vsel %vm163, %v200, 0.0
    %202 = vadd.xlane.f32.xlu0 %v201
    %v203 = vpop.xlane.xlu0 %202
    %v204 = vlog2.pop %v203
    %v205 = vmul.f32 %v204, 0.6931472
    %v206 = vadd.f32 %v197, %v205
    %v207 = vsel %vm163, %v189, 0.0
    %208 = vadd.xlane.f32.xlu0 %v207
    %v209 = vpop.xlane.xlu0 %208
    %v210 = vmul.f32 %v209, 64.0
    %v211 = vsub.f32 %v206, %v210
    %v212 = vrot.slane %v211, 4
    %v213 = vadd.f32 %v211, %v212
    %v214 = vrot.slane %v213, 2
    %v215 = vadd.f32 %v213, %v214
    %v216 = vrot.slane %v215, 1
    %v217 = vadd.f32 %v215, %v216
    %v218 = vmul.f32 %v217, 0.125
    %v219 = vmul.f32 %v144, 2.0
    %v220 = vsub.f32 2.0, %v219
    %v221 = vmax.f32 %v220, 0.0
    %v222 = vrsqrt.pop %v221
    %v223 = vmul.f32 %v221, %v222
    %vm224 = vcmp.eq.f32.partialorder %v221, inf
    %v225 = vsel %vm224, %v221, %v223
    %vm226 = vcmp.eq.f32.partialorder %v221, 0.0
    %v227 = vand.u32 %v221, 2147483648
    %v228 = vsel %vm226, %v227, %v225
    %v229 = vsub.f32 %v173, %v155
    %v230 = vsub.f32 1.0, %v173
    %v231 = vsel %vm151, 0.0, %v230
    %v232 = vmul.f32 %v228, %v229
    %v233 = vsub.f32 0.5, %v228
    %v234 = vmax.f32 %v233, 0.0
    %v235 = vmul.f32 %v234, %v231
    %v236 = vsel %vm163, %v232, 0.0
    %237 = vadd.xlane.f32.xlu0 %v236
    %v238 = vpop.xlane.xlu0 %237
    %v239 = vrot.slane %v238, 4
    %v240 = vadd.f32 %v238, %v239
    %v241 = vrot.slane %v240, 2
    %v242 = vadd.f32 %v240, %v241
    %v243 = vrot.slane %v242, 1
    %v244 = vadd.f32 %v242, %v243
    %v245 = vsel %vm163, %v235, 0.0
    %246 = vadd.xlane.f32.xlu0 %v245
    %v247 = vpop.xlane.xlu0 %246
    %v248 = vrot.slane %v247, 4
    %v249 = vadd.f32 %v247, %v248
    %v250 = vrot.slane %v249, 2
    %v251 = vadd.f32 %v249, %v250
    %v252 = vrot.slane %v251, 1
    %v253 = vadd.f32 %v251, %v252
    %vm254 = vcmp.gt.f32.partialorder %v232, 0.0
    %v255 = vsel %vm254, 1, 0
    %v256 = vcvt.s32.f32 %v255
    %v257 = vsel %vm163, %v256, 0.0
    %258 = vadd.xlane.f32.xlu0 %v257
    %v259 = vpop.xlane.xlu0 %258
    %v260 = vrot.slane %v259, 4
    %v261 = vadd.f32 %v259, %v260
    %v262 = vrot.slane %v261, 2
    %v263 = vadd.f32 %v261, %v262
    %v264 = vrot.slane %v263, 1
    %v265 = vadd.f32 %v263, %v264
    %vm266 = vcmp.gt.f32.partialorder %v235, 0.0
    %v267 = vsel %vm266, 1, 0
    %v268 = vcvt.s32.f32 %v267
    %v269 = vsel %vm163, %v268, 0.0
    %270 = vadd.xlane.f32.xlu0 %v269
    %v271 = vpop.xlane.xlu0 %270
    %v272 = vrot.slane %v271, 4
    %v273 = vadd.f32 %v271, %v272
    %v274 = vrot.slane %v273, 2
    %v275 = vadd.f32 %v273, %v274
    %v276 = vrot.slane %v275, 1
    %v277 = vadd.f32 %v275, %v276
    %vm278 = vcmp.gt.f32.partialorder %v265, 0.0
    %v279 = vmax.f32 %v265, 1.0
    %v280 = vrcp.pop %v279
    %v281 = vmul.f32 %v244, %v280
    %v282 = vsel %vm278, %v281, 0.0
    %vm283 = vcmp.gt.f32.partialorder %v277, 0.0
    %v284 = vmax.f32 %v277, 1.0
    %v285 = vrcp.pop %v284
    %v286 = vmul.f32 %v253, %v285
    %v287 = vsel %vm283, %v286, 0.0
    %v288 = vadd.f32 %v282, %v287
    %v289 = vadd.f32 %v218, %v288
    %vm290 = vcmask 0
    %291 = vst.msk [vmem:[#allocation7] sm:$0x1] %vm290, %v289
    // Predicated region
    $region22: #{tpu_custom_call.1} parent=1 // pred_check
      _
    $region23: #{tpu_custom_call.1} parent=1 // pred_check_branch
      %293 = sbr.rel (0) target = $region25
    $region24: #{tpu_custom_call.1} parent=1 // pred_region
      %s295 = ssub.s32 16, 16
      %296 = vsyncadd [#allocation4], %s295
      %s298 = sshll.u32 [#allocation7], 4
      %s299 = int_to_ptr.vmem [resolvable:$true] %s298
      %301 = dma.vmem_to_hbm [thread:$0]  %s299, 16, %s3, [#allocation4]
    $region25: #{tpu_custom_call.1} parent=1 // pred_fallthru
      _
    // Predicated region
    $region26: #{tpu_custom_call.1} parent=1 // pred_check
      _
    $region27: #{tpu_custom_call.1} parent=1 // pred_check_branch
      %303 = sbr.rel (0) target = $region29
    $region28: #{tpu_custom_call.1} parent=1 // pred_region
      %304 = dma.done [#allocation4], 16
    $region29: #{tpu_custom_call.1} parent=1 // pred_fallthru
      _
    %305 = vsyncpa [#allocation3], 1
    %306 = vsyncpa [#allocation6], 1
    %307 = vsyncpa [#allocation4], 1

</llo_original>
